<compile_context>
chip_gen: v7x
topology: tpu7x:2x2x1
jax: 0.10.0
libtpu: 0.0.40
codegen_flags: <defaults>
</compile_context>

<pallas_src>
import functools
import math

import jax
import jax.numpy as jnp
import numpy as np
from jax.experimental import pallas as pl
from jax.experimental.pallas import tpu as pltpu


def _round_up(x, m):
    return (x + m - 1) // m * m


def _t5_relpos_bias_kernel(emb_ref, out_ref, line_ref, *, scale, causal,
                           num_buckets, nb_eff, max_exact, log_ratio):
    """Toeplitz-expansion kernel.

    emb_ref : (num_buckets,) f32 in SMEM -- raw embedding table.
    out_ref : (tm, tn) output tile in VMEM.
    line_ref: (8, W) f32 VMEM scratch holding the staggered bias line,
              line_ref[r, u] == bias(n = base + r - u).
    """
    tm, tn = out_ref.shape
    _, w = line_ref.shape
    tm8 = _round_up(tm, 8)

    row0 = pl.program_id(0) * tm
    col0 = pl.program_id(1) * tn

    # ---------------- Preamble: O(tm + tn) bucketize + gather ----------------
    # For output element (local row 8*g + r, local col c) the relative-position
    # term is n = (row0 + 8*g + r) - (col0 + c).  With
    #     base = row0 - col0 + (tm8 - 8),
    # the staggered line satisfies line[r, off_g + c] == bias(n) for the
    # static lane offset off_g = tm8 - 8 - 8*g, so every 8-row group of the
    # tile is just a shifted copy of this line.
    base = row0 - col0 + (tm8 - 8)
    n = (base
         + jax.lax.broadcasted_iota(jnp.int32, (8, w), 0)
         - jax.lax.broadcasted_iota(jnp.int32, (8, w), 1))

    if not causal:
        offset = jnp.where(n < 0, jnp.int32(nb_eff), jnp.int32(0))
        n = jnp.abs(n)
    else:
        offset = None
        n = jnp.maximum(n, 0)

    is_small = n < max_exact

    # Same algebraic form as the PyTorch module (all f32):
    #   max_exact + trunc(log(n / max_exact) / log(max_distance / max_exact)
    #                     * (nb_eff - max_exact))
    # log(0) guard: the clamp only feeds positions where is_small wins anyway,
    # and the int cast truncates toward zero exactly like .long().
    n_f = jnp.maximum(n, 1).astype(jnp.float32)
    val_if_large = max_exact + (
        jnp.log(n_f / jnp.float32(max_exact)) / jnp.float32(log_ratio)
        * jnp.float32(nb_eff - max_exact)).astype(jnp.int32)
    val_if_large = jnp.minimum(val_if_large, nb_eff - 1)

    bucket = jnp.where(is_small, n, val_if_large)
    if offset is not None:
        bucket = bucket + offset

    # Embedding gather: pair-merge on the low bucket bit + carry-select over
    # the num_buckets//2 pairs.  Runs on ~(tm+tn)/128 vregs only, so it is
    # negligible next to the tile writeback and co-issues under the stores.
    is_odd = (bucket & 1) != 0
    hi = bucket >> 1
    npairs = (num_buckets + 1) // 2

    def emb(idx):
        # Pad value is never selected (bucket <= num_buckets - 1).
        return emb_ref[idx] if idx < num_buckets else jnp.float32(0.0)

    bias = jnp.where(is_odd, emb(1), emb(0))
    for p in range(1, npairs):            # static unroll; num_buckets is tiny
        pair = jnp.where(is_odd, emb(2 * p + 1), emb(2 * p))
        bias = jnp.where(hi == p, pair, bias)

    line_ref[...] = bias * jnp.float32(scale)

    # ---------------- Expansion: statically shifted copies ------------------
    # Fully static unroll with static (lane) offsets: each group is one
    # unaligned-but-static VMEM load plus one dense 8-sublane store, so the
    # vst/HBM path is the only binding resource.
    ng = (tm + 7) // 8
    for g in range(ng):
        rows = min(8, tm - 8 * g)
        off = tm8 - 8 - 8 * g                      # static, >= 0
        vals = line_ref[pl.ds(0, rows), pl.ds(off, tn)]
        out_ref[pl.ds(8 * g, rows), :] = vals.astype(out_ref.dtype)


def t5_relative_position_bias(x, emb_weight, *, scale, causal=False,
                              num_buckets=32, max_distance=128,
                              block_i=512, block_j=2048,
                              out_dtype=jnp.float32):
    """JAX/Pallas equivalent of T5RelativePositionBias.forward.

    x:          array with shape (..., I, J); only the shape is used.
    emb_weight: (num_buckets, 1) embedding table.
    returns:    (I, J) bias in out_dtype (default f32 for torch parity).
    """
    i, j = int(x.shape[-2]), int(x.shape[-1])

    nb_eff = num_buckets if causal else num_buckets // 2
    max_exact = nb_eff // 2
    assert max_exact >= 1, "num_buckets too small for T5 bucketization"
    log_ratio = math.log(max_distance / max_exact)

    # ---- tile selection (blocks must be (8,128)-divisible or full-dim) ----
    tm = i if block_i >= i else max(8, (min(block_i, i) // 8) * 8)
    tn = j if block_j >= j else max(128, (min(block_j, j) // 128) * 128)
    # v7x has two TensorCores; make sure small/medium shapes still produce
    # at least two parallel tiles so the second core is not idle.
    if pl.cdiv(i, tm) * pl.cdiv(j, tn) == 1 and i >= 16:
        tm = _round_up(pl.cdiv(i, 2), 8)
    grid = (pl.cdiv(i, tm), pl.cdiv(j, tn))

    tm8 = _round_up(tm, 8)
    wpad = _round_up(max(tm8 - 8 + tn, 128), 128)

    emb = emb_weight.astype(jnp.float32).reshape(num_buckets)

    kernel = functools.partial(
        _t5_relpos_bias_kernel,
        scale=float(scale), causal=causal, num_buckets=num_buckets,
        nb_eff=nb_eff, max_exact=max_exact, log_ratio=log_ratio)

    itemsize = jnp.dtype(out_dtype).itemsize
    # Derived VMEM budget: double-buffered output tile + line scratch + slack.
    vmem_bytes = int(2 * tm * tn * itemsize + 8 * wpad * 4 + (2 << 20))

    return pl.pallas_call(
        kernel,
        out_shape=jax.ShapeDtypeStruct((i, j), out_dtype),
        grid=grid,
        in_specs=[pl.BlockSpec(memory_space=pltpu.MemorySpace.SMEM)],
        out_specs=pl.BlockSpec((tm, tn), lambda ti, tj: (ti, tj)),
        scratch_shapes=[pltpu.VMEM((8, wpad), jnp.float32)],
        compiler_params=pltpu.CompilerParams(
            dimension_semantics=("parallel", "parallel"),
            vmem_limit_bytes=vmem_bytes),
        cost_estimate=pl.CostEstimate(
            flops=60 * 8 * wpad * grid[0] * grid[1],
            transcendentals=8 * wpad * grid[0] * grid[1],
            bytes_accessed=i * j * itemsize + num_buckets * 4),
    )(emb)


def _reference_bias(i, j, emb_weight, *, scale, causal, num_buckets,
                    max_distance):
    """Pure-numpy reference mirroring the PyTorch module (f32 bucketization)."""
    q = np.arange(i)[:, None]
    k = np.arange(j)[None, :]
    n = -(k - q)
    ret = np.zeros((i, j), np.int64)
    nb = num_buckets
    if not causal:
        nb //= 2
        ret += (n < 0).astype(np.int64) * nb
        n = np.abs(n)
    else:
        n = np.maximum(n, 0)
    max_exact = nb // 2
    is_small = n < max_exact
    n_f = np.maximum(n, 1).astype(np.float32)     # log(0) guard; masked below
    vif = max_exact + (np.log(n_f / np.float32(max_exact))
                       / np.float32(math.log(max_distance / max_exact))
                       * np.float32(nb - max_exact)).astype(np.int64)
    vif = np.minimum(vif, nb - 1)
    bucket = ret + np.where(is_small, n, vif)
    emb = np.asarray(emb_weight).reshape(num_buckets)
    return emb[bucket] * scale


if __name__ == "__main__":
    key = jax.random.PRNGKey(0)
    k_emb, k_emb2, k_x = jax.random.split(key, 3)

    num_buckets = 32
    max_distance = 128

    # ---- Test 1: attention-like small shape, non-causal ----
    scale = 32 ** -0.5
    emb_weight = jax.random.normal(k_emb, (num_buckets, 1), jnp.float32)
    x = jax.random.normal(k_x, (2, 4, 16, 16), jnp.float32)

    bias = t5_relative_position_bias(
        x, emb_weight, scale=scale, causal=False,
        num_buckets=num_buckets, max_distance=max_distance)
    bias = jax.block_until_ready(bias)
    ref = _reference_bias(
        x.shape[-2], x.shape[-1], np.asarray(emb_weight),
        scale=scale, causal=False,
        num_buckets=num_buckets, max_distance=max_distance)
    np.testing.assert_allclose(np.asarray(bias), ref, rtol=1e-5, atol=1e-6)

    # ---- Test 2: causal, multi-tile grid with partial edge tiles ----
    scale2 = 64 ** -0.5
    emb_weight2 = jax.random.normal(k_emb2, (num_buckets, 1), jnp.float32)
    i2, j2 = 160, 160
    x2 = jnp.zeros((1, 1, i2, j2), jnp.float32)

    bias2 = t5_relative_position_bias(
        x2, emb_weight2, scale=scale2, causal=True,
        num_buckets=num_buckets, max_distance=max_distance,
        block_i=64, block_j=128)
    bias2 = jax.block_until_ready(bias2)
    ref2 = _reference_bias(
        i2, j2, np.asarray(emb_weight2),
        scale=scale2, causal=True,
        num_buckets=num_buckets, max_distance=max_distance)
    np.testing.assert_allclose(np.asarray(bias2), ref2, rtol=1e-5, atol=1e-6)

    print("KERNEL_OK")
</pallas_src>

<mosaic_0001>
module attributes {stable_mosaic.version = 11 : i64} {
  func.func @_t5_relpos_bias_kernel(%arg0: i32, %arg1: i32, %arg2: memref<32xf32, #tpu.memory_space<smem>>, %arg3: memref<8x16xf32, #tpu.memory_space<vmem>>, %arg4: memref<8x128xf32, #tpu.memory_space<vmem>>) attributes {dimension_semantics = [#tpu.dimension_semantics<parallel>, #tpu.dimension_semantics<parallel>], iteration_bounds = array<i64: 2, 1>, scalar_prefetch = 0 : i64, scratch_operands = 1 : i64, tpu.core_type = #tpu.core_type<tc>, window_params = [{transform_indices = @transform_0, window_bounds = array<i64: 32>}, {transform_indices = @transform_1, window_bounds = array<i64: 8, 16>}]} {
    %c8_i32 = arith.constant 8 : i32
    %0 = arith.muli %arg0, %c8_i32 : i32
    %c16_i32 = arith.constant 16 : i32
    %1 = arith.muli %arg1, %c16_i32 : i32
    %2 = arith.subi %0, %1 : i32
    %c0_i32 = arith.constant 0 : i32
    %3 = arith.addi %2, %c0_i32 : i32
    %4 = tpu.iota {dimensions = array<i32: 0>} : vector<8x128xi32>
    %5 = vector.broadcast %3 : i32 to vector<8x128xi32>
    %6 = arith.addi %5, %4 : vector<8x128xi32>
    %7 = tpu.iota {dimensions = array<i32: 1>} : vector<8x128xi32>
    %8 = arith.subi %6, %7 : vector<8x128xi32>
    %c0_i32_0 = arith.constant 0 : i32
    %9 = vector.broadcast %c0_i32_0 : i32 to vector<8x128xi32>
    %10 = arith.cmpi slt, %8, %9 : vector<8x128xi32>
    %c16_i32_1 = arith.constant 16 : i32
    %c0_i32_2 = arith.constant 0 : i32
    %11 = vector.broadcast %c16_i32_1 : i32 to vector<8x128xi32>
    %12 = vector.broadcast %c0_i32_2 : i32 to vector<8x128xi32>
    %13 = arith.select %10, %11, %12 : vector<8x128xi1>, vector<8x128xi32>
    %14 = math.absi %8 : vector<8x128xi32>
    %c8_i32_3 = arith.constant 8 : i32
    %15 = vector.broadcast %c8_i32_3 : i32 to vector<8x128xi32>
    %16 = arith.cmpi slt, %14, %15 : vector<8x128xi32>
    %c1_i32 = arith.constant 1 : i32
    %17 = vector.broadcast %c1_i32 : i32 to vector<8x128xi32>
    %18 = arith.maxsi %14, %17 : vector<8x128xi32>
    %19 = arith.sitofp %18 : vector<8x128xi32> to vector<8x128xf32>
    %cst = arith.constant 8.000000e+00 : f32
    %20 = vector.broadcast %cst : f32 to vector<8x128xf32>
    %21 = arith.divf %19, %20 : vector<8x128xf32>
    %22 = math.log %21 : vector<8x128xf32>
    %cst_4 = arith.constant 2.77258873 : f32
    %23 = vector.broadcast %cst_4 : f32 to vector<8x128xf32>
    %24 = arith.divf %22, %23 : vector<8x128xf32>
    %cst_5 = arith.constant 8.000000e+00 : f32
    %25 = vector.broadcast %cst_5 : f32 to vector<8x128xf32>
    %26 = arith.mulf %24, %25 : vector<8x128xf32>
    %27 = arith.fptosi %26 : vector<8x128xf32> to vector<8x128xi32>
    %c8_i32_6 = arith.constant 8 : i32
    %28 = vector.broadcast %c8_i32_6 : i32 to vector<8x128xi32>
    %29 = arith.addi %28, %27 : vector<8x128xi32>
    %c15_i32 = arith.constant 15 : i32
    %30 = vector.broadcast %c15_i32 : i32 to vector<8x128xi32>
    %31 = arith.minsi %29, %30 : vector<8x128xi32>
    %32 = arith.select %16, %14, %31 : vector<8x128xi1>, vector<8x128xi32>
    %33 = arith.addi %32, %13 : vector<8x128xi32>
    %c1_i32_7 = arith.constant 1 : i32
    %34 = vector.broadcast %c1_i32_7 : i32 to vector<8x128xi32>
    %35 = arith.andi %33, %34 : vector<8x128xi32>
    %c0_i32_8 = arith.constant 0 : i32
    %36 = vector.broadcast %c0_i32_8 : i32 to vector<8x128xi32>
    %37 = arith.cmpi ne, %35, %36 : vector<8x128xi32>
    %c1_i32_9 = arith.constant 1 : i32
    %38 = vector.broadcast %c1_i32_9 : i32 to vector<8x128xi32>
    %39 = arith.shrsi %33, %38 : vector<8x128xi32>
    %c1 = arith.constant 1 : index
    %40 = memref.load %arg2[%c1] : memref<32xf32, #tpu.memory_space<smem>>
    %c0 = arith.constant 0 : index
    %41 = memref.load %arg2[%c0] : memref<32xf32, #tpu.memory_space<smem>>
    %42 = vector.broadcast %40 : f32 to vector<8x128xf32>
    %43 = vector.broadcast %41 : f32 to vector<8x128xf32>
    %44 = arith.select %37, %42, %43 : vector<8x128xi1>, vector<8x128xf32>
    %c3 = arith.constant 3 : index
    %45 = memref.load %arg2[%c3] : memref<32xf32, #tpu.memory_space<smem>>
    %c2 = arith.constant 2 : index
    %46 = memref.load %arg2[%c2] : memref<32xf32, #tpu.memory_space<smem>>
    %47 = vector.broadcast %45 : f32 to vector<8x128xf32>
    %48 = vector.broadcast %46 : f32 to vector<8x128xf32>
    %49 = arith.select %37, %47, %48 : vector<8x128xi1>, vector<8x128xf32>
    %c1_i32_10 = arith.constant 1 : i32
    %50 = vector.broadcast %c1_i32_10 : i32 to vector<8x128xi32>
    %51 = arith.cmpi eq, %39, %50 : vector<8x128xi32>
    %52 = arith.select %51, %49, %44 : vector<8x128xi1>, vector<8x128xf32>
    %c5 = arith.constant 5 : index
    %53 = memref.load %arg2[%c5] : memref<32xf32, #tpu.memory_space<smem>>
    %c4 = arith.constant 4 : index
    %54 = memref.load %arg2[%c4] : memref<32xf32, #tpu.memory_space<smem>>
    %55 = vector.broadcast %53 : f32 to vector<8x128xf32>
    %56 = vector.broadcast %54 : f32 to vector<8x128xf32>
    %57 = arith.select %37, %55, %56 : vector<8x128xi1>, vector<8x128xf32>
    %c2_i32 = arith.constant 2 : i32
    %58 = vector.broadcast %c2_i32 : i32 to vector<8x128xi32>
    %59 = arith.cmpi eq, %39, %58 : vector<8x128xi32>
    %60 = arith.select %59, %57, %52 : vector<8x128xi1>, vector<8x128xf32>
    %c7 = arith.constant 7 : index
    %61 = memref.load %arg2[%c7] : memref<32xf32, #tpu.memory_space<smem>>
    %c6 = arith.constant 6 : index
    %62 = memref.load %arg2[%c6] : memref<32xf32, #tpu.memory_space<smem>>
    %63 = vector.broadcast %61 : f32 to vector<8x128xf32>
    %64 = vector.broadcast %62 : f32 to vector<8x128xf32>
    %65 = arith.select %37, %63, %64 : vector<8x128xi1>, vector<8x128xf32>
    %c3_i32 = arith.constant 3 : i32
    %66 = vector.broadcast %c3_i32 : i32 to vector<8x128xi32>
    %67 = arith.cmpi eq, %39, %66 : vector<8x128xi32>
    %68 = arith.select %67, %65, %60 : vector<8x128xi1>, vector<8x128xf32>
    %c9 = arith.constant 9 : index
    %69 = memref.load %arg2[%c9] : memref<32xf32, #tpu.memory_space<smem>>
    %c8 = arith.constant 8 : index
    %70 = memref.load %arg2[%c8] : memref<32xf32, #tpu.memory_space<smem>>
    %71 = vector.broadcast %69 : f32 to vector<8x128xf32>
    %72 = vector.broadcast %70 : f32 to vector<8x128xf32>
    %73 = arith.select %37, %71, %72 : vector<8x128xi1>, vector<8x128xf32>
    %c4_i32 = arith.constant 4 : i32
    %74 = vector.broadcast %c4_i32 : i32 to vector<8x128xi32>
    %75 = arith.cmpi eq, %39, %74 : vector<8x128xi32>
    %76 = arith.select %75, %73, %68 : vector<8x128xi1>, vector<8x128xf32>
    %c11 = arith.constant 11 : index
    %77 = memref.load %arg2[%c11] : memref<32xf32, #tpu.memory_space<smem>>
    %c10 = arith.constant 10 : index
    %78 = memref.load %arg2[%c10] : memref<32xf32, #tpu.memory_space<smem>>
    %79 = vector.broadcast %77 : f32 to vector<8x128xf32>
    %80 = vector.broadcast %78 : f32 to vector<8x128xf32>
    %81 = arith.select %37, %79, %80 : vector<8x128xi1>, vector<8x128xf32>
    %c5_i32 = arith.constant 5 : i32
    %82 = vector.broadcast %c5_i32 : i32 to vector<8x128xi32>
    %83 = arith.cmpi eq, %39, %82 : vector<8x128xi32>
    %84 = arith.select %83, %81, %76 : vector<8x128xi1>, vector<8x128xf32>
    %c13 = arith.constant 13 : index
    %85 = memref.load %arg2[%c13] : memref<32xf32, #tpu.memory_space<smem>>
    %c12 = arith.constant 12 : index
    %86 = memref.load %arg2[%c12] : memref<32xf32, #tpu.memory_space<smem>>
    %87 = vector.broadcast %85 : f32 to vector<8x128xf32>
    %88 = vector.broadcast %86 : f32 to vector<8x128xf32>
    %89 = arith.select %37, %87, %88 : vector<8x128xi1>, vector<8x128xf32>
    %c6_i32 = arith.constant 6 : i32
    %90 = vector.broadcast %c6_i32 : i32 to vector<8x128xi32>
    %91 = arith.cmpi eq, %39, %90 : vector<8x128xi32>
    %92 = arith.select %91, %89, %84 : vector<8x128xi1>, vector<8x128xf32>
    %c15 = arith.constant 15 : index
    %93 = memref.load %arg2[%c15] : memref<32xf32, #tpu.memory_space<smem>>
    %c14 = arith.constant 14 : index
    %94 = memref.load %arg2[%c14] : memref<32xf32, #tpu.memory_space<smem>>
    %95 = vector.broadcast %93 : f32 to vector<8x128xf32>
    %96 = vector.broadcast %94 : f32 to vector<8x128xf32>
    %97 = arith.select %37, %95, %96 : vector<8x128xi1>, vector<8x128xf32>
    %c7_i32 = arith.constant 7 : i32
    %98 = vector.broadcast %c7_i32 : i32 to vector<8x128xi32>
    %99 = arith.cmpi eq, %39, %98 : vector<8x128xi32>
    %100 = arith.select %99, %97, %92 : vector<8x128xi1>, vector<8x128xf32>
    %c17 = arith.constant 17 : index
    %101 = memref.load %arg2[%c17] : memref<32xf32, #tpu.memory_space<smem>>
    %c16 = arith.constant 16 : index
    %102 = memref.load %arg2[%c16] : memref<32xf32, #tpu.memory_space<smem>>
    %103 = vector.broadcast %101 : f32 to vector<8x128xf32>
    %104 = vector.broadcast %102 : f32 to vector<8x128xf32>
    %105 = arith.select %37, %103, %104 : vector<8x128xi1>, vector<8x128xf32>
    %c8_i32_11 = arith.constant 8 : i32
    %106 = vector.broadcast %c8_i32_11 : i32 to vector<8x128xi32>
    %107 = arith.cmpi eq, %39, %106 : vector<8x128xi32>
    %108 = arith.select %107, %105, %100 : vector<8x128xi1>, vector<8x128xf32>
    %c19 = arith.constant 19 : index
    %109 = memref.load %arg2[%c19] : memref<32xf32, #tpu.memory_space<smem>>
    %c18 = arith.constant 18 : index
    %110 = memref.load %arg2[%c18] : memref<32xf32, #tpu.memory_space<smem>>
    %111 = vector.broadcast %109 : f32 to vector<8x128xf32>
    %112 = vector.broadcast %110 : f32 to vector<8x128xf32>
    %113 = arith.select %37, %111, %112 : vector<8x128xi1>, vector<8x128xf32>
    %c9_i32 = arith.constant 9 : i32
    %114 = vector.broadcast %c9_i32 : i32 to vector<8x128xi32>
    %115 = arith.cmpi eq, %39, %114 : vector<8x128xi32>
    %116 = arith.select %115, %113, %108 : vector<8x128xi1>, vector<8x128xf32>
    %c21 = arith.constant 21 : index
    %117 = memref.load %arg2[%c21] : memref<32xf32, #tpu.memory_space<smem>>
    %c20 = arith.constant 20 : index
    %118 = memref.load %arg2[%c20] : memref<32xf32, #tpu.memory_space<smem>>
    %119 = vector.broadcast %117 : f32 to vector<8x128xf32>
    %120 = vector.broadcast %118 : f32 to vector<8x128xf32>
    %121 = arith.select %37, %119, %120 : vector<8x128xi1>, vector<8x128xf32>
    %c10_i32 = arith.constant 10 : i32
    %122 = vector.broadcast %c10_i32 : i32 to vector<8x128xi32>
    %123 = arith.cmpi eq, %39, %122 : vector<8x128xi32>
    %124 = arith.select %123, %121, %116 : vector<8x128xi1>, vector<8x128xf32>
    %c23 = arith.constant 23 : index
    %125 = memref.load %arg2[%c23] : memref<32xf32, #tpu.memory_space<smem>>
    %c22 = arith.constant 22 : index
    %126 = memref.load %arg2[%c22] : memref<32xf32, #tpu.memory_space<smem>>
    %127 = vector.broadcast %125 : f32 to vector<8x128xf32>
    %128 = vector.broadcast %126 : f32 to vector<8x128xf32>
    %129 = arith.select %37, %127, %128 : vector<8x128xi1>, vector<8x128xf32>
    %c11_i32 = arith.constant 11 : i32
    %130 = vector.broadcast %c11_i32 : i32 to vector<8x128xi32>
    %131 = arith.cmpi eq, %39, %130 : vector<8x128xi32>
    %132 = arith.select %131, %129, %124 : vector<8x128xi1>, vector<8x128xf32>
    %c25 = arith.constant 25 : index
    %133 = memref.load %arg2[%c25] : memref<32xf32, #tpu.memory_space<smem>>
    %c24 = arith.constant 24 : index
    %134 = memref.load %arg2[%c24] : memref<32xf32, #tpu.memory_space<smem>>
    %135 = vector.broadcast %133 : f32 to vector<8x128xf32>
    %136 = vector.broadcast %134 : f32 to vector<8x128xf32>
    %137 = arith.select %37, %135, %136 : vector<8x128xi1>, vector<8x128xf32>
    %c12_i32 = arith.constant 12 : i32
    %138 = vector.broadcast %c12_i32 : i32 to vector<8x128xi32>
    %139 = arith.cmpi eq, %39, %138 : vector<8x128xi32>
    %140 = arith.select %139, %137, %132 : vector<8x128xi1>, vector<8x128xf32>
    %c27 = arith.constant 27 : index
    %141 = memref.load %arg2[%c27] : memref<32xf32, #tpu.memory_space<smem>>
    %c26 = arith.constant 26 : index
    %142 = memref.load %arg2[%c26] : memref<32xf32, #tpu.memory_space<smem>>
    %143 = vector.broadcast %141 : f32 to vector<8x128xf32>
    %144 = vector.broadcast %142 : f32 to vector<8x128xf32>
    %145 = arith.select %37, %143, %144 : vector<8x128xi1>, vector<8x128xf32>
    %c13_i32 = arith.constant 13 : i32
    %146 = vector.broadcast %c13_i32 : i32 to vector<8x128xi32>
    %147 = arith.cmpi eq, %39, %146 : vector<8x128xi32>
    %148 = arith.select %147, %145, %140 : vector<8x128xi1>, vector<8x128xf32>
    %c29 = arith.constant 29 : index
    %149 = memref.load %arg2[%c29] : memref<32xf32, #tpu.memory_space<smem>>
    %c28 = arith.constant 28 : index
    %150 = memref.load %arg2[%c28] : memref<32xf32, #tpu.memory_space<smem>>
    %151 = vector.broadcast %149 : f32 to vector<8x128xf32>
    %152 = vector.broadcast %150 : f32 to vector<8x128xf32>
    %153 = arith.select %37, %151, %152 : vector<8x128xi1>, vector<8x128xf32>
    %c14_i32 = arith.constant 14 : i32
    %154 = vector.broadcast %c14_i32 : i32 to vector<8x128xi32>
    %155 = arith.cmpi eq, %39, %154 : vector<8x128xi32>
    %156 = arith.select %155, %153, %148 : vector<8x128xi1>, vector<8x128xf32>
    %c31 = arith.constant 31 : index
    %157 = memref.load %arg2[%c31] : memref<32xf32, #tpu.memory_space<smem>>
    %c30 = arith.constant 30 : index
    %158 = memref.load %arg2[%c30] : memref<32xf32, #tpu.memory_space<smem>>
    %159 = vector.broadcast %157 : f32 to vector<8x128xf32>
    %160 = vector.broadcast %158 : f32 to vector<8x128xf32>
    %161 = arith.select %37, %159, %160 : vector<8x128xi1>, vector<8x128xf32>
    %c15_i32_12 = arith.constant 15 : i32
    %162 = vector.broadcast %c15_i32_12 : i32 to vector<8x128xi32>
    %163 = arith.cmpi eq, %39, %162 : vector<8x128xi32>
    %164 = arith.select %163, %161, %156 : vector<8x128xi1>, vector<8x128xf32>
    %cst_13 = arith.constant 0.176776692 : f32
    %165 = vector.broadcast %cst_13 : f32 to vector<8x128xf32>
    %166 = arith.mulf %164, %165 : vector<8x128xf32>
    %c0_14 = arith.constant 0 : index
    %c0_15 = arith.constant 0 : index
    %167 = vector.load %arg4[%c0_14, %c0_15] : memref<8x128xf32, #tpu.memory_space<vmem>>, vector<8x128xf32>
    tpu.vector_store %arg4[%c0_14, %c0_15], %166 {strides = array<i32>} : memref<8x128xf32, #tpu.memory_space<vmem>>, vector<8x128xf32>,
    %c0_16 = arith.constant 0 : index
    %c0_17 = arith.constant 0 : index
    %168 = vector.load %arg4[%c0_16, %c0_17] : memref<8x128xf32, #tpu.memory_space<vmem>>, vector<8x16xf32>
    %c0_18 = arith.constant 0 : index
    %c0_19 = arith.constant 0 : index
    %169 = vector.load %arg3[%c0_18, %c0_19] : memref<8x16xf32, #tpu.memory_space<vmem>>, vector<8x16xf32>
    tpu.vector_store %arg3[%c0_18, %c0_19], %168 {strides = array<i32>} : memref<8x16xf32, #tpu.memory_space<vmem>>, vector<8x16xf32>,
    return
  }
  func.func @transform_0(%arg0: i32, %arg1: i32) -> i32 {
    %c0_i32 = arith.constant 0 : i32
    %c0_i32_0 = arith.constant 0 : i32
    return %c0_i32 : i32
  }
  func.func @transform_1(%arg0: i32, %arg1: i32) -> (i32, i32) {
    %c0_i32 = arith.constant 0 : i32
    return %arg0, %arg1 : i32, i32
  }
}

</mosaic_0001>

<llo_original>
// kernel: tpu_custom_call.1
$region0: #{tpu_custom_call.1}
  #allocation0 [shape = 'u32[]', space=smem, size = 0x4, offset = 0x4, fixed_abs, tag = 'smem constant byte address 0x4 - core index']
  #allocation1 [shape = 'u32[144,128]{1,0:T(1,128)}', space=vmem, size = 0x12000, scoped, tag = 'internal scratch']
  #allocation2 [shape = 'f32[8,128]{1,0:T(8,128)}', space=vmem, size = 0x1000, scoped, tag = 'scratch operand']
  %s0 = inlined_call_operand.hbm [shape: f32[32], index: 0, kind: input, shape index: {}]
  %s1 = inlined_call_operand.hbm [shape: f32[16,16], index: 1, kind: output, shape index: {}]
  %s2 = sld [smem:[#allocation0]]
  $region41: #{tpu_custom_call.1} parent=0
    _
  %s4 = ssub.s32 1, %s2
  %s5 = scalar_select 0, %s4, %s2
  $region1: #{tpu_custom_call.1} parent=0
    #allocation3 [shape = 'u8[512]{0}', space=smem, size = 0x200, scoped, tag = 'input window, operand 0, single buffered']
    #allocation4 [shape = 's32[2]{0}', space=sflag, size = 0x8, scoped, tag = 'scoped memory for tpu_custom_call.1']
    #allocation5 [shape = 's32[2]{0}', space=sflag, size = 0x8, scoped, tag = 'scoped memory for tpu_custom_call.1']
    #allocation6 [shape = 'u8[8192]{0}', space=vmem, size = 0x2000, scoped, tag = 'output window, operand 0']
    %6 = vsyncpa [#allocation5], 0
    %7 = vsyncpa [#allocation4], 0
    %s8 = scalar_lea.sflag [#allocation4], 1
    %9 = vsyncpa %s8, 0
    loop: start=0, step=1, limit=4
    $region2: #{tpu_custom_call.1} parent=1 // loop_pre_header
      _
    $region3: #{tpu_custom_call.1} parent=1 // loop_header
      %s11 = sphi 0, %s15
      %p12 = scmp.ge.s32.totalorder %s11, 4
      %s18 = sphi 0, %s30
      %s19 = sphi 0, %s26
      %s20 = sphi 0, %s18
      %s21 = sphi 0, %s19
      %s22 = sphi 0, %s20
      %s23 = sphi 0, %s21
      %s31 = sphi 0, %s31
      %s33 = sphi 0, %s31
      %s34 = sphi 0, %s33
      %s48 = sphi 0, %s34
      %s56 = sphi 0, %s58
      %s59 = sphi 0, %s56
      %s60 = sphi 0, %s59
      %s76 = sphi 0, %s60
    $region4: #{tpu_custom_call.1} parent=1 // loop_header_branch
      %14 = sbr.rel (%p12) target = $region8
    $region5: #{tpu_custom_call.1} parent=1 // loop_body
      %s16 = ssub.s32 %s11, 1
      %s17 = ssub.s32 %s11, 2
      %s24 = sadd.s32 1, %s19
      %p25 = scmp.ge.s32.totalorder %s24, 1
      %s26 = scalar_select %p25, 0, %s24
      %s27 = sadd.s32 1, %s18
      %s28 = scalar_select %p25, %s27, %s18
      %p29 = scmp.ge.s32.totalorder %s28, 2
      %s30 = scalar_select %p29, 0, %s28
      %s32 = sadd.s32 %s31, 1
      %p35 = scmp.eq.s32.totalorder %s11, 1
      %p36 = scmp.ne.s32.totalorder %s31, %s33
      %p37 = scmp.eq.s32.totalorder %s11, 0
      %p38 = por %p36, %p37
      %p39 = scmp.ne.s32.totalorder %s31, %s33
      %p40 = scmp.eq.s32.totalorder %s16, 1
      %p41 = por %p39, %p40
      %p42 = scmp.ne.s32.totalorder %s33, %s34
      %p43 = scmp.eq.s32.totalorder %s16, 0
      %p44 = por %p42, %p43
      %p45 = scmp.ne.s32.totalorder %s33, %s34
      %p46 = scmp.eq.s32.totalorder %s17, 1
      %p47 = por %p45, %p46
      %p49 = scmp.ne.s32.totalorder %s34, %s48
      %p50 = scmp.eq.s32.totalorder %s17, 0
      %p51 = por %p49, %p50
      %s52 = ssub.s32 %s18, %s30
      %s53 = ssub.s32 %s19, %s26
      %s54 = sor.u32 %s52, %s53
      %p55 = scmp.eq.s32.totalorder %s54, 0
      %s57 = sadd.s32 %s56, 1
      %s58 = scalar_select %p55, %s56, %s57
      %p61 = pneg %p55
      %p62 = scmp.eq.s32.totalorder %s11, 1
      %p63 = por %p61, %p62
      %p64 = scmp.ne.s32.totalorder %s56, %s59
      %p65 = scmp.eq.s32.totalorder %s11, 0
      %p66 = por %p64, %p65
      %p67 = scmp.ne.s32.totalorder %s56, %s59
      %p68 = scmp.eq.s32.totalorder %s16, 1
      %p69 = por %p67, %p68
      %p70 = scmp.ne.s32.totalorder %s59, %s60
      %p71 = scmp.eq.s32.totalorder %s16, 0
      %p72 = por %p70, %p71
      %p73 = scmp.ne.s32.totalorder %s59, %s60
      %p74 = scmp.eq.s32.totalorder %s17, 1
      %p75 = por %p73, %p74
      %p77 = scmp.ne.s32.totalorder %s60, %s76
      %p78 = scmp.eq.s32.totalorder %s17, 0
      %p79 = por %p77, %p78
      %p80 = scmp.le.s32.totalorder 1, %s11
      %p81 = scmp.lt.s32.totalorder %s11, 3
      %p82 = pnand %p80, %p81
      %p83 = pneg %p82
      // Predicated region
      $region9: #{tpu_custom_call.1} parent=5 // pred_check
        _
      $region10: #{tpu_custom_call.1} parent=5 // pred_check_branch
        %85 = sbr.rel (%p82) target = $region12
      $region11: #{tpu_custom_call.1} parent=5 // pred_region
        %s86 = ssub.s32 %s11, 1
        // Predicated region
        $region13: #{tpu_custom_call.1} parent=11 // pred_check
          %p87 = pneg %p44
        $region14: #{tpu_custom_call.1} parent=11 // pred_check_branch
          %89 = sbr.rel (%p87) target = $region16
        $region15: #{tpu_custom_call.1} parent=11 // pred_region
          %s91 = ssub.s32 16, 16
          %92 = vsyncadd [#allocation5], %s91
          %95 = dma.hbm_to_smem %s0, 16, [#allocation3], [#allocation5]
        $region16: #{tpu_custom_call.1} parent=11 // pred_fallthru
          _
      $region12: #{tpu_custom_call.1} parent=5 // pred_fallthru
        _
      %p96 = scmp.lt.s32.totalorder %s11, 2
      // Predicated region
      $region17: #{tpu_custom_call.1} parent=5 // pred_check
        %p97 = pneg %p96
      $region18: #{tpu_custom_call.1} parent=5 // pred_check_branch
        %99 = sbr.rel (%p97) target = $region20
      $region19: #{tpu_custom_call.1} parent=5 // pred_region
        _
      $region20: #{tpu_custom_call.1} parent=5 // pred_fallthru
        _
      %p100 = scmp.le.s32.totalorder 1, %s11
      %p101 = scmp.lt.s32.totalorder %s11, 3
      %p102 = pnand %p100, %p101
      %p103 = pneg %p102
      // Predicated region
      $region21: #{tpu_custom_call.1} parent=5 // pred_check
        _
      $region22: #{tpu_custom_call.1} parent=5 // pred_check_branch
        %105 = sbr.rel (%p102) target = $region24
      $region23: #{tpu_custom_call.1} parent=5 // pred_region
        %s106 = ssub.s32 %s11, 1
        // Predicated region
        $region25: #{tpu_custom_call.1} parent=23 // pred_check
          %p107 = pneg %p44
        $region26: #{tpu_custom_call.1} parent=23 // pred_check_branch
          %109 = sbr.rel (%p107) target = $region28
        $region27: #{tpu_custom_call.1} parent=23 // pred_region
          %110 = dma.done [#allocation5], 16
        $region28: #{tpu_custom_call.1} parent=23 // pred_fallthru
          _
        %111 = sfence
        %p112 = pneg %p44
        %p113 = pneg %p41
        %p114 = pneg %p72
        %p115 = pneg %p69
        %s116 = sand.u32 %s59, 1
        %s117 = scalar_lea.sflag [#allocation4], %s116
        %s118 = sand.u32 %s59, 1
        %s119 = smul.addr %s118, 8
        %s120 = scalar_lea.vmem [#allocation6], %s119
        %s121 = smul.u32 %s20, 8
        %s122 = smul.u32 %s21, 16
        %s123 = ssub.s32 %s121, %s122
        %v124 = vlaneseq
        %v125 = vshrl.u32 %v124, 7
        %v126 = vstv %s123
        %v127 = vadd.s32 %v126, %v125
        %v128 = vlaneseq
        %v129 = vand.u32 %v128, 127
        %v130 = vsub.s32 %v127, %v129
        %vm131 = vcmp.lt.s32.totalorder %v130, 0
        %v132 = vsel %vm131, 16, 0
        %v133 = vsub.s32 0, %v130
        %v134 = vsel %vm131, %v133, %v130
        %vm135 = vcmp.lt.s32.totalorder %v134, 8
        %vm136 = vcmp.gt.s32.totalorder %v134, 1
        %v137 = vsel %vm136, %v134, 1
        %v138 = vcvt.s32.f32 %v137
        %v139 = vrcp.pop 8.0
        %v140 = vmul.f32 %v138, %v139
        %v141 = vlog2.pop %v140
        %v142 = vmul.f32 %v141, 0.6931472
        %v143 = vrcp.pop 2.7725887
        %v144 = vmul.f32 %v142, %v143
        %v145 = vmul.f32 %v144, 8.0
        %v146 = vcvt.f32.s32.to.zero.pseudo %v145
        %v147 = vadd.s32 %v146, 8
        %vm148 = vcmp.lt.s32.totalorder %v147, 15
        %v149 = vsel %vm148, %v147, 15
        %v150 = vsel %vm135, %v134, %v149
        %v151 = vadd.s32 %v150, %v132
        %v152 = vand.u32 %v151, 1
        %vm153 = vcmp.ne.s32.totalorder %v152, 0
        %v154 = vshra.s32 %v151, 1
        %s155 = sld [smem:[#allocation3 + $0x1]]
        %s156 = sld [smem:[#allocation3]]
        %v157 = vstv %s155
        %v158 = vstv %s156
        %v159 = vsel %vm153, %v157, %v158
        %s160 = sld [smem:[#allocation3 + $0x3]]
        %s161 = sld [smem:[#allocation3 + $0x2]]
        %v162 = vstv %s160
        %v163 = vstv %s161
        %v164 = vsel %vm153, %v162, %v163
        %vm165 = vcmp.eq.s32.totalorder %v154, 1
        %v166 = vsel %vm165, %v164, %v159
        %s167 = sld [smem:[#allocation3 + $0x5]]
        %s168 = sld [smem:[#allocation3 + $0x4]]
        %v169 = vstv %s167
        %v170 = vstv %s168
        %v171 = vsel %vm153, %v169, %v170
        %vm172 = vcmp.eq.s32.totalorder %v154, 2
        %v173 = vsel %vm172, %v171, %v166
        %s174 = sld [smem:[#allocation3 + $0x7]]
        %s175 = sld [smem:[#allocation3 + $0x6]]
        %v176 = vstv %s174
        %v177 = vstv %s175
        %v178 = vsel %vm153, %v176, %v177
        %vm179 = vcmp.eq.s32.totalorder %v154, 3
        %v180 = vsel %vm179, %v178, %v173
        %s181 = sld [smem:[#allocation3 + $0x9]]
        %s182 = sld [smem:[#allocation3 + $0x8]]
        %v183 = vstv %s181
        %v184 = vstv %s182
        %v185 = vsel %vm153, %v183, %v184
        %vm186 = vcmp.eq.s32.totalorder %v154, 4
        %v187 = vsel %vm186, %v185, %v180
        %s188 = sld [smem:[#allocation3 + $0xb]]
        %s189 = sld [smem:[#allocation3 + $0xa]]
        %v190 = vstv %s188
        %v191 = vstv %s189
        %v192 = vsel %vm153, %v190, %v191
        %vm193 = vcmp.eq.s32.totalorder %v154, 5
        %v194 = vsel %vm193, %v192, %v187
        %s195 = sld [smem:[#allocation3 + $0xd]]
        %s196 = sld [smem:[#allocation3 + $0xc]]
        %v197 = vstv %s195
        %v198 = vstv %s196
        %v199 = vsel %vm153, %v197, %v198
        %vm200 = vcmp.eq.s32.totalorder %v154, 6
        %v201 = vsel %vm200, %v199, %v194
        %s202 = sld [smem:[#allocation3 + $0xf]]
        %s203 = sld [smem:[#allocation3 + $0xe]]
        %v204 = vstv %s202
        %v205 = vstv %s203
        %v206 = vsel %vm153, %v204, %v205
        %vm207 = vcmp.eq.s32.totalorder %v154, 7
        %v208 = vsel %vm207, %v206, %v201
        %s209 = sld [smem:[#allocation3 + $0x11]]
        %s210 = sld [smem:[#allocation3 + $0x10]]
        %v211 = vstv %s209
        %v212 = vstv %s210
        %v213 = vsel %vm153, %v211, %v212
        %vm214 = vcmp.eq.s32.totalorder %v154, 8
        %v215 = vsel %vm214, %v213, %v208
        %s216 = sld [smem:[#allocation3 + $0x13]]
        %s217 = sld [smem:[#allocation3 + $0x12]]
        %v218 = vstv %s216
        %v219 = vstv %s217
        %v220 = vsel %vm153, %v218, %v219
        %vm221 = vcmp.eq.s32.totalorder %v154, 9
        %v222 = vsel %vm221, %v220, %v215
        %s223 = sld [smem:[#allocation3 + $0x15]]
        %s224 = sld [smem:[#allocation3 + $0x14]]
        %v225 = vstv %s223
        %v226 = vstv %s224
        %v227 = vsel %vm153, %v225, %v226
        %vm228 = vcmp.eq.s32.totalorder %v154, 10
        %v229 = vsel %vm228, %v227, %v222
        %s230 = sld [smem:[#allocation3 + $0x17]]
        %s231 = sld [smem:[#allocation3 + $0x16]]
        %v232 = vstv %s230
        %v233 = vstv %s231
        %v234 = vsel %vm153, %v232, %v233
        %vm235 = vcmp.eq.s32.totalorder %v154, 11
        %v236 = vsel %vm235, %v234, %v229
        %s237 = sld [smem:[#allocation3 + $0x19]]
        %s238 = sld [smem:[#allocation3 + $0x18]]
        %v239 = vstv %s237
        %v240 = vstv %s238
        %v241 = vsel %vm153, %v239, %v240
        %vm242 = vcmp.eq.s32.totalorder %v154, 12
        %v243 = vsel %vm242, %v241, %v236
        %s244 = sld [smem:[#allocation3 + $0x1b]]
        %s245 = sld [smem:[#allocation3 + $0x1a]]
        %v246 = vstv %s244
        %v247 = vstv %s245
        %v248 = vsel %vm153, %v246, %v247
        %vm249 = vcmp.eq.s32.totalorder %v154, 13
        %v250 = vsel %vm249, %v248, %v243
        %s251 = sld [smem:[#allocation3 + $0x1d]]
        %s252 = sld [smem:[#allocation3 + $0x1c]]
        %v253 = vstv %s251
        %v254 = vstv %s252
        %v255 = vsel %vm153, %v253, %v254
        %vm256 = vcmp.eq.s32.totalorder %v154, 14
        %v257 = vsel %vm256, %v255, %v250
        %s258 = sld [smem:[#allocation3 + $0x1f]]
        %s259 = sld [smem:[#allocation3 + $0x1e]]
        %v260 = vstv %s258
        %v261 = vstv %s259
        %v262 = vsel %vm153, %v260, %v261
        %vm263 = vcmp.eq.s32.totalorder %v154, 15
        %v264 = vsel %vm263, %v262, %v257
        %v265 = vmul.f32 %v264, 0.17677669
        %266 = vst [vmem:[#allocation2] sm:$0xff] %v265
        %v267 = vld [vmem:[#allocation2] sm:$0xff]
        %vm268 = vcmask 130048
        %269 = vst.msk [vmem:[%s120] sm:$0xff] %vm268, %v267
        %s270 = sand.u32 %s59, 1
        %s271 = scalar_lea.sflag [#allocation4], %s270
        %s272 = sand.u32 %s59, 1
        %s273 = smul.addr %s272, 8
        %s274 = scalar_lea.vmem [#allocation6], %s273
        // Predicated region
        $region29: #{tpu_custom_call.1} parent=23 // pred_check
          %p275 = pneg %p69
        $region30: #{tpu_custom_call.1} parent=23 // pred_check_branch
          %277 = sbr.rel (%p275) target = $region32
        $region31: #{tpu_custom_call.1} parent=23 // pred_region
          %s279 = ssub.s32 128, 128
          %280 = vsyncadd %s271, %s279
          %s281 = sadd.s32 %s21, %s20
          %s282 = smul.addr %s281, 128
          %s283 = scalar_lea.hbm %s1, %s282
          %s285 = sshll.u32 %s274, 4
          %s286 = int_to_ptr.vmem [resolvable:$true] %s285
          %288 = dma.vmem_to_hbm [thread:$0]  %s286, 128, %s283, %s271
        $region32: #{tpu_custom_call.1} parent=23 // pred_fallthru
          _
      $region24: #{tpu_custom_call.1} parent=5 // pred_fallthru
        _
      %p289 = scmp.le.s32.totalorder 2, %s11
      // Predicated region
      $region33: #{tpu_custom_call.1} parent=5 // pred_check
        %p290 = pneg %p289
      $region34: #{tpu_custom_call.1} parent=5 // pred_check_branch
        %292 = sbr.rel (%p290) target = $region36
      $region35: #{tpu_custom_call.1} parent=5 // pred_region
        %s293 = ssub.s32 %s11, 2
        // Predicated region
        $region37: #{tpu_custom_call.1} parent=35 // pred_check
          %p294 = pneg %p75
        $region38: #{tpu_custom_call.1} parent=35 // pred_check_branch
          %296 = sbr.rel (%p294) target = $region40
        $region39: #{tpu_custom_call.1} parent=35 // pred_region
          %s297 = sand.u32 %s60, 1
          %s298 = scalar_lea.sflag [#allocation4], %s297
          %s299 = sand.u32 %s60, 1
          %s300 = smul.addr %s299, 8
          %s301 = scalar_lea.vmem [#allocation6], %s300
          %302 = dma.done %s298, 128
        $region40: #{tpu_custom_call.1} parent=35 // pred_fallthru
          _
      $region36: #{tpu_custom_call.1} parent=5 // pred_fallthru
        _
    $region6: #{tpu_custom_call.1} parent=1 // loop_footer
      %s15 = sadd.s32 1, %s11
    $region7: #{tpu_custom_call.1} parent=1 // loop_footer_branch
      %10 = sbr.rel target = $region3
    $region8: #{tpu_custom_call.1} parent=1 // loop_exit
      _
    %303 = vsyncpa [#allocation4], 1
    %s304 = scalar_lea.sflag [#allocation4], 1
    %305 = vsyncpa %s304, 1
    %306 = vsyncpa [#allocation5], 1
    %s307 = scalar_lea.sflag [#allocation5], 1
    %308 = vsyncpa %s307, 1

</llo_original>
